<compile_context>
chip_gen: v7x
topology: tpu7x:2x2x1
jax: 0.10.0
libtpu: 0.0.40
codegen_flags: <defaults>
</compile_context>

<pallas_src>
from functools import partial

import jax
import jax.numpy as jnp
from jax.experimental import pallas as pl
from jax.experimental.pallas import tpu as pltpu


def _round_up(x, m):
    return (x + m - 1) // m * m


def _round_down(x, m):
    return (x // m) * m


def _vmem_capacity_bytes(default=64 << 20):
    """Physical VMEM of the attached TPU; conservative 64 MiB (v7x) fallback."""
    try:
        info = pltpu.get_tpu_info()
        cap = int(getattr(info, "vmem_capacity_bytes", 0))
        if cap > 0:
            return cap
    except Exception:
        pass
    return default


# ---------------------------------------------------------------------------
# Kernel: one fused (value||gate) matmul + GLU epilogue (+ optional skip add)
# ---------------------------------------------------------------------------
def _glu_bn_linear_kernel(x_ref, w_ref, b_ref, o_ref, *, tn, skip):
    # x_ref : [tm, k_pad]        activation tile (double-buffered)
    # w_ref : [k_pad, 2*tn] bf16 BN-folded value||gate weights (single-buffered, resident)
    # b_ref : [1, 2*tn]     f32  BN-folded value||gate bias
    # o_ref : [tm, tn]           lane-dense output tile (tn % 128 == 0)
    x = x_ref[...]
    z = jnp.dot(x.astype(w_ref.dtype), w_ref[...],
                preferred_element_type=jnp.float32) + b_ref[...]
    a = z[:, :tn]                       # value half (lane-aligned static slice)
    g = z[:, tn:]                       # gate half
    fx = a * jax.nn.sigmoid(g)          # GLU, f32 epilogue (v5e has no bf16 VPU/EUP)
    if skip:                            # in_features == out_features
        if tn == x.shape[-1]:           # single N tile: the whole x tile is the residual
            xs = x
        else:                           # pick the x columns matching this N tile
            j = pl.program_id(0)
            xs = x_ref[:, pl.ds(pl.multiple_of(j * tn, 128), tn)]
        fx = fx + xs.astype(jnp.float32)
    o_ref[...] = fx.astype(o_ref.dtype)


# ---------------------------------------------------------------------------
# One-time parameter preparation (fold BN, split GLU halves, pad, pack per N tile)
# ---------------------------------------------------------------------------
def prepare_params(w, b, gamma, beta, running_mean, running_var, eps, out_features,
                   compute_dtype=jnp.bfloat16, tn=None):
    """w: [2*out, in] (PyTorch Linear layout); b/gamma/beta/mean/var: [2*out].

    Returns (w_packed [k_pad, n_tiles*2*tn] compute_dtype, b_packed [1, n_tiles*2*tn] f32, meta).
    Per N tile, columns [j*2*tn, j*2*tn+tn) are the value columns and the next tn the gate
    columns, so one dot produces both GLU halves with lane-aligned static slices.
    """
    two_out, in_features = w.shape
    assert two_out == 2 * out_features
    skip = (in_features == out_features)
    H = out_features

    # Fold BatchNorm (inference mode, running stats) into the Linear weight/bias.
    scale = gamma / jnp.sqrt(running_var + eps)
    w_f = w * scale[:, None]
    b_f = (b - running_mean) * scale + beta

    wa = jnp.transpose(w_f[:H, :])      # [in, out] value half
    wg = jnp.transpose(w_f[H:, :])      # [in, out] gate  half
    ba = b_f[:H]
    bg = b_f[H:]

    # N-tile width: the largest multiple of 128 whose single-buffered value+gate slab fits
    # in ~half the per-generation VMEM budget (v7x 64 MiB vs v5e/v6e 128 MiB).
    n_full = _round_up(H, 128)
    if tn is None:
        budget = max(_vmem_capacity_bytes() - (16 << 20), 8 << 20)
        bytes_per_col = 2 * in_features * jnp.dtype(compute_dtype).itemsize
        tn = _round_down((budget // 2) // max(bytes_per_col, 1), 128)
        tn = min(max(tn, 128), n_full)
    if tn % 128 != 0:
        raise ValueError("tn must be a multiple of 128 for lane-dense stores")
    n_tiles = (H + tn - 1) // tn
    n_total = n_tiles * tn

    # With the skip connection the kernel adds x[:, j*tn:(j+1)*tn] to output tile j, so x
    # (and the weight K axis) is zero-padded to n_total columns; zero weight rows contribute
    # exactly 0 to the matmul.
    k_pad = n_total if skip else in_features

    wa_p = jnp.pad(wa, ((0, k_pad - in_features), (0, n_total - H)))
    wg_p = jnp.pad(wg, ((0, k_pad - in_features), (0, n_total - H)))
    ba_p = jnp.pad(ba, (0, n_total - H))
    bg_p = jnp.pad(bg, (0, n_total - H))

    w_packed = jnp.concatenate(
        [wa_p.reshape(k_pad, n_tiles, tn), wg_p.reshape(k_pad, n_tiles, tn)], axis=2
    ).reshape(k_pad, n_tiles * 2 * tn).astype(compute_dtype)
    b_packed = jnp.concatenate(
        [ba_p.reshape(1, n_tiles, tn), bg_p.reshape(1, n_tiles, tn)], axis=2
    ).reshape(1, n_tiles * 2 * tn).astype(jnp.float32)

    meta = dict(in_features=in_features, out_features=H, tn=int(tn),
                n_tiles=int(n_tiles), k_pad=int(k_pad), skip=bool(skip))
    return w_packed, b_packed, meta


# ---------------------------------------------------------------------------
# Wrapper
# ---------------------------------------------------------------------------
def glu_layer_1d(x, w_packed, b_packed, meta, *, tm=None, out_dtype=None):
    """x: [M, in_features]  ->  [M, out_features]."""
    M, in_feats = x.shape
    assert in_feats == meta["in_features"], "x feature dim does not match prepared params"
    H = meta["out_features"]
    tn, n_tiles, k_pad, skip = meta["tn"], meta["n_tiles"], meta["k_pad"], meta["skip"]
    n_total = n_tiles * tn
    out_dtype = x.dtype if out_dtype is None else out_dtype

    # Pad x columns up to the (zero-extended) weight K dim -- identity when unneeded.
    x_in = x if k_pad == in_feats else jnp.pad(x, ((0, 0), (0, k_pad - in_feats)))

    vmem_cap = _vmem_capacity_bytes()
    w_itemsize = w_packed.dtype.itemsize
    x_itemsize = x_in.dtype.itemsize
    o_itemsize = jnp.dtype(out_dtype).itemsize

    resident = k_pad * 2 * tn * w_itemsize + 2 * tn * 4     # single-buffered W + bias
    if tm is None:
        # Biggest M tile that fits VMEM: double-buffered x/out tiles + f32 matmul intermediate.
        budget = max(vmem_cap - (8 << 20), 16 << 20)
        per_row = 2 * k_pad * x_itemsize + 2 * tn * o_itemsize + 8 * tn
        tm = _round_down((budget - resident - (4 << 20)) // max(per_row, 1), 256)
        tm = min(max(tm, 256), 2048)
        # Give the v7x megacore at least two M tiles when M is large enough.
        tm = min(tm, max(256, _round_up(pl.cdiv(M, 2), 256)))
    tm = max(8, _round_up(int(tm), 8))
    tm = min(tm, _round_up(M, 8))
    grid_m = pl.cdiv(M, tm)

    vmem_limit = (resident
                  + 2 * tm * k_pad * x_itemsize      # double-buffered x tiles
                  + 2 * tm * tn * o_itemsize         # double-buffered out tiles
                  + tm * 2 * tn * 4                  # f32 matmul result / epilogue temp
                  + (4 << 20))                       # headroom
    vmem_limit = int(min(max(vmem_limit, 32 << 20), vmem_cap - (4 << 20)))

    kernel = partial(_glu_bn_linear_kernel, tn=tn, skip=skip)

    out = pl.pallas_call(
        kernel,
        out_shape=jax.ShapeDtypeStruct((M, n_total), out_dtype),
        grid_spec=pltpu.PrefetchScalarGridSpec(
            num_scalar_prefetch=0,
            # N tiles outer so the weight slab stays resident across the inner M sweep.
            grid=(n_tiles, grid_m),
            in_specs=[
                pl.BlockSpec((tm, k_pad), lambda n, m: (m, 0)),             # x (pipelined)
                pl.BlockSpec((k_pad, 2 * tn), lambda n, m: (0, n),
                             pipeline_mode=pl.Buffered(1)),                 # W (resident)
                pl.BlockSpec((1, 2 * tn), lambda n, m: (0, n),
                             pipeline_mode=pl.Buffered(1)),                 # bias
            ],
            out_specs=pl.BlockSpec((tm, tn), lambda n, m: (m, n)),          # lane-dense
        ),
        compiler_params=pltpu.CompilerParams(
            dimension_semantics=("parallel", "parallel"),
            vmem_limit_bytes=vmem_limit,
        ),
    )(x_in, w_packed, b_packed)

    return out if n_total == H else out[:, :H]


# ---------------------------------------------------------------------------
# Pure-JAX reference (inference-mode GLULayer1d forward)
# ---------------------------------------------------------------------------
def reference(x, w, b, gamma, beta, running_mean, running_var, eps, out_features):
    y = x @ w.T + b
    z = gamma * (y - running_mean) / jnp.sqrt(running_var + eps) + beta
    a, g = z[:, :out_features], z[:, out_features:]
    fx = a * jax.nn.sigmoid(g)
    if x.shape[-1] == out_features:
        return x + fx
    return fx


if __name__ == "__main__":
    key = jax.random.PRNGKey(0)
    EPS = 0.8

    # ---- case 1: in == out -> skip connection active -------------------------------
    B, IN, OUT = 64, 32, 32
    kx, kw, kb, kg, kbt, km, kv, key = jax.random.split(key, 8)
    x = jax.random.normal(kx, (B, IN), dtype=jnp.float32)
    w = jax.random.normal(kw, (2 * OUT, IN), dtype=jnp.float32) * 0.1   # Linear weight [2*out, in]
    b = jax.random.normal(kb, (2 * OUT,), dtype=jnp.float32) * 0.1
    gamma = 1.0 + 0.1 * jax.random.normal(kg, (2 * OUT,), dtype=jnp.float32)
    beta = 0.1 * jax.random.normal(kbt, (2 * OUT,), dtype=jnp.float32)
    mean = 0.1 * jax.random.normal(km, (2 * OUT,), dtype=jnp.float32)
    var = jax.random.uniform(kv, (2 * OUT,), dtype=jnp.float32, minval=0.5, maxval=1.5)

    ref = jax.block_until_ready(reference(x, w, b, gamma, beta, mean, var, EPS, OUT))
    w_p, b_p, meta = prepare_params(w, b, gamma, beta, mean, var, EPS, OUT)
    # Small explicit tm so the tiny test still exercises the multi-step pipelined path.
    out = jax.block_until_ready(glu_layer_1d(x, w_p, b_p, meta, tm=16))
    assert out.shape == (B, OUT), f"bad output shape {out.shape}"
    assert jnp.allclose(out, ref, atol=2e-2, rtol=2e-2), "skip-path mismatch vs reference"

    # ---- case 2: in != out -> no skip, auto tile selection --------------------------
    OUT2 = 64
    kw2, kb2, kg2, kbt2, km2, kv2, key = jax.random.split(key, 7)
    w2 = jax.random.normal(kw2, (2 * OUT2, IN), dtype=jnp.float32) * 0.1
    b2 = jax.random.normal(kb2, (2 * OUT2,), dtype=jnp.float32) * 0.1
    gamma2 = 1.0 + 0.1 * jax.random.normal(kg2, (2 * OUT2,), dtype=jnp.float32)
    beta2 = 0.1 * jax.random.normal(kbt2, (2 * OUT2,), dtype=jnp.float32)
    mean2 = 0.1 * jax.random.normal(km2, (2 * OUT2,), dtype=jnp.float32)
    var2 = jax.random.uniform(kv2, (2 * OUT2,), dtype=jnp.float32, minval=0.5, maxval=1.5)

    ref2 = jax.block_until_ready(reference(x, w2, b2, gamma2, beta2, mean2, var2, EPS, OUT2))
    w_p2, b_p2, meta2 = prepare_params(w2, b2, gamma2, beta2, mean2, var2, EPS, OUT2)
    out2 = jax.block_until_ready(glu_layer_1d(x, w_p2, b_p2, meta2))
    assert out2.shape == (B, OUT2), f"bad output shape {out2.shape}"
    assert jnp.allclose(out2, ref2, atol=2e-2, rtol=2e-2), "no-skip mismatch vs reference"

    print("KERNEL_OK")
</pallas_src>

<mosaic_0001>
module attributes {stable_mosaic.version = 11 : i64} {
  func.func @_glu_bn_linear_kernel(%arg0: i32, %arg1: i32, %arg2: memref<16x128xf32, #tpu.memory_space<vmem>>, %arg3: memref<128x256xbf16, #tpu.memory_space<vmem>>, %arg4: memref<1x256xf32, #tpu.memory_space<vmem>>, %arg5: memref<16x128xf32, #tpu.memory_space<vmem>>) attributes {dimension_semantics = [#tpu.dimension_semantics<parallel>, #tpu.dimension_semantics<parallel>], iteration_bounds = array<i64: 1, 4>, scalar_prefetch = 0 : i64, scratch_operands = 0 : i64, tpu.core_type = #tpu.core_type<tc>, window_params = [{transform_indices = @transform_0, window_bounds = array<i64: 16, 128>}, {pipeline_mode = #tpu.pipeline_mode<synchronous>, transform_indices = @transform_1, window_bounds = array<i64: 128, 256>}, {pipeline_mode = #tpu.pipeline_mode<synchronous>, transform_indices = @transform_2, window_bounds = array<i64: 1, 256>}, {transform_indices = @transform_3, window_bounds = array<i64: 16, 128>}]} {
    %c0 = arith.constant 0 : index
    %c0_0 = arith.constant 0 : index
    %0 = vector.load %arg2[%c0, %c0_0] : memref<16x128xf32, #tpu.memory_space<vmem>>, vector<16x128xf32>
    %1 = arith.truncf %0 : vector<16x128xf32> to vector<16x128xbf16>
    %c0_1 = arith.constant 0 : index
    %c0_2 = arith.constant 0 : index
    %2 = vector.load %arg3[%c0_1, %c0_2] : memref<128x256xbf16, #tpu.memory_space<vmem>>, vector<128x256xbf16>
    %cst = arith.constant dense<0.000000e+00> : vector<16x256xf32>
    %3 = tpu.matmul %1, %2, %cst {dimension_numbers = #tpu.dot_dimension_numbers<[1], [0], [0], [1], [0, 0, 1, 1], [], []>} : vector<16x128xbf16>, vector<128x256xbf16>, vector<16x256xf32> -> vector<16x256xf32>
    %c0_3 = arith.constant 0 : index
    %c0_4 = arith.constant 0 : index
    %4 = vector.load %arg4[%c0_3, %c0_4] : memref<1x256xf32, #tpu.memory_space<vmem>>, vector<1x256xf32>
    %5 = vector.broadcast %4 : vector<1x256xf32> to vector<16x256xf32>
    %6 = arith.addf %3, %5 : vector<16x256xf32>
    %7 = vector.extract_strided_slice %6 {offsets = [0, 0], sizes = [16, 128], strides = [1, 1]} : vector<16x256xf32> to vector<16x128xf32>
    %8 = vector.extract_strided_slice %6 {offsets = [0, 128], sizes = [16, 128], strides = [1, 1]} : vector<16x256xf32> to vector<16x128xf32>
    %9 = arith.negf %8 : vector<16x128xf32>
    %10 = math.exp %9 : vector<16x128xf32>
    %cst_5 = arith.constant 1.000000e+00 : f32
    %11 = vector.broadcast %cst_5 : f32 to vector<16x128xf32>
    %12 = arith.addf %11, %10 : vector<16x128xf32>
    %13 = arith.divf %11, %12 : vector<16x128xf32>
    %14 = arith.mulf %7, %13 : vector<16x128xf32>
    %15 = arith.addf %14, %0 : vector<16x128xf32>
    %c0_6 = arith.constant 0 : index
    %c0_7 = arith.constant 0 : index
    %16 = vector.load %arg5[%c0_6, %c0_7] : memref<16x128xf32, #tpu.memory_space<vmem>>, vector<16x128xf32>
    tpu.vector_store %arg5[%c0_6, %c0_7], %15 {strides = array<i32>} : memref<16x128xf32, #tpu.memory_space<vmem>>, vector<16x128xf32>,
    return
  }
  func.func @transform_0(%arg0: i32, %arg1: i32) -> (i32, i32) {
    %c0_i32 = arith.constant 0 : i32
    %c0_i32_0 = arith.constant 0 : i32
    return %arg1, %c0_i32 : i32, i32
  }
  func.func @transform_1(%arg0: i32, %arg1: i32) -> (i32, i32) {
    %c0_i32 = arith.constant 0 : i32
    %c0_i32_0 = arith.constant 0 : i32
    return %c0_i32, %arg0 : i32, i32
  }
  func.func @transform_2(%arg0: i32, %arg1: i32) -> (i32, i32) {
    %c0_i32 = arith.constant 0 : i32
    %c0_i32_0 = arith.constant 0 : i32
    return %c0_i32, %arg0 : i32, i32
  }
  func.func @transform_3(%arg0: i32, %arg1: i32) -> (i32, i32) {
    %c0_i32 = arith.constant 0 : i32
    return %arg1, %arg0 : i32, i32
  }
}

</mosaic_0001>

<llo_original>
// kernel: tpu_custom_call.1
$region0: #{tpu_custom_call.1}
  #allocation0 [shape = 'u32[]', space=smem, size = 0x4, offset = 0x4, fixed_abs, tag = 'smem constant byte address 0x4 - core index']
  #allocation1 [shape = 'u32[144,128]{1,0:T(1,128)}', space=vmem, size = 0x12000, scoped, tag = 'internal scratch']
  %s0 = inlined_call_operand.hbm [shape: f32[64,128], index: 0, kind: input, shape index: {}]
  %s1 = inlined_call_operand.hbm [shape: bf16[128,256], index: 1, kind: input, shape index: {}]
  %s2 = inlined_call_operand.vmem [shape: f32[1,256], index: 2, kind: input, shape index: {}]
  %s3 = inlined_call_operand.hbm [shape: f32[64,128], index: 3, kind: output, shape index: {}]
  %s4 = sld [smem:[#allocation0]]
  $region53: #{tpu_custom_call.1} parent=0
    _
  %s6 = ssub.s32 1, %s4
  %s7 = scalar_select 0, %s6, %s4
  $region1: #{tpu_custom_call.1} parent=0
    #allocation2 [shape = 'u8[16384]{0}', space=vmem, size = 0x4000, scoped, tag = 'input window, operand 0']
    #allocation3 [shape = 's32[2]{0}', space=sflag, size = 0x8, scoped, tag = 'scoped memory for tpu_custom_call.1']
    #allocation4 [shape = 's32[2]{0}', space=sflag, size = 0x8, scoped, tag = 'scoped memory for tpu_custom_call.1']
    #allocation5 [shape = 'u8[65536]{0}', space=vmem, size = 0x10000, scoped, tag = 'input window, operand 1, single buffered']
    #allocation6 [shape = 's32[1]{0}', space=sflag, size = 0x4, scoped, tag = 'scoped memory for tpu_custom_call.1']
    #allocation7 [shape = 'u8[16384]{0}', space=vmem, size = 0x4000, scoped, tag = 'output window, operand 0']
    %8 = vsyncpa [#allocation3], 0
    %s9 = scalar_lea.sflag [#allocation3], 1
    %10 = vsyncpa %s9, 0
    %11 = vsyncpa [#allocation6], 0
    %12 = vsyncpa [#allocation4], 0
    %s13 = scalar_lea.sflag [#allocation4], 1
    %14 = vsyncpa %s13, 0
    loop: start=0, step=1, limit=6
    $region2: #{tpu_custom_call.1} parent=1 // loop_pre_header
      _
    $region3: #{tpu_custom_call.1} parent=1 // loop_header
      %s16 = sphi 0, %s20
      %p17 = scmp.ge.s32.totalorder %s16, 6
      %s23 = sphi 0, %s35
      %s24 = sphi 0, %s31
      %s25 = sphi 0, %s23
      %s26 = sphi 0, %s24
      %s27 = sphi 0, %s25
      %s28 = sphi 0, %s26
      %s38 = sphi 0, %s40
      %s41 = sphi 0, %s38
      %s42 = sphi 0, %s41
      %s58 = sphi 0, %s42
      %s64 = sphi 0, %s66
      %s67 = sphi 0, %s64
      %s68 = sphi 0, %s67
      %s84 = sphi 0, %s68
      %s90 = sphi 0, %s92
      %s93 = sphi 0, %s90
      %s94 = sphi 0, %s93
      %s110 = sphi 0, %s94
      %s118 = sphi 0, %s120
      %s121 = sphi 0, %s118
      %s122 = sphi 0, %s121
      %s138 = sphi 0, %s122
    $region4: #{tpu_custom_call.1} parent=1 // loop_header_branch
      %19 = sbr.rel (%p17) target = $region8
    $region5: #{tpu_custom_call.1} parent=1 // loop_body
      %s21 = ssub.s32 %s16, 1
      %s22 = ssub.s32 %s16, 2
      %s29 = sadd.s32 1, %s24
      %p30 = scmp.ge.s32.totalorder %s29, 4
      %s31 = scalar_select %p30, 0, %s29
      %s32 = sadd.s32 1, %s23
      %s33 = scalar_select %p30, %s32, %s23
      %p34 = scmp.ge.s32.totalorder %s33, 1
      %s35 = scalar_select %p34, 0, %s33
      %s36 = ssub.s32 %s24, %s31
      %p37 = scmp.eq.s32.totalorder %s36, 0
      %s39 = sadd.s32 %s38, 1
      %s40 = scalar_select %p37, %s38, %s39
      %p43 = pneg %p37
      %p44 = scmp.eq.s32.totalorder %s16, 3
      %p45 = por %p43, %p44
      %p46 = scmp.ne.s32.totalorder %s38, %s41
      %p47 = scmp.eq.s32.totalorder %s16, 0
      %p48 = por %p46, %p47
      %p49 = scmp.ne.s32.totalorder %s38, %s41
      %p50 = scmp.eq.s32.totalorder %s21, 3
      %p51 = por %p49, %p50
      %p52 = scmp.ne.s32.totalorder %s41, %s42
      %p53 = scmp.eq.s32.totalorder %s21, 0
      %p54 = por %p52, %p53
      %p55 = scmp.ne.s32.totalorder %s41, %s42
      %p56 = scmp.eq.s32.totalorder %s22, 3
      %p57 = por %p55, %p56
      %p59 = scmp.ne.s32.totalorder %s42, %s58
      %p60 = scmp.eq.s32.totalorder %s22, 0
      %p61 = por %p59, %p60
      %s62 = ssub.s32 %s23, %s35
      %p63 = scmp.eq.s32.totalorder %s62, 0
      %s65 = sadd.s32 %s64, 1
      %s66 = scalar_select %p63, %s64, %s65
      %p69 = pneg %p63
      %p70 = scmp.eq.s32.totalorder %s16, 3
      %p71 = por %p69, %p70
      %p72 = scmp.ne.s32.totalorder %s64, %s67
      %p73 = scmp.eq.s32.totalorder %s16, 0
      %p74 = por %p72, %p73
      %p75 = scmp.ne.s32.totalorder %s64, %s67
      %p76 = scmp.eq.s32.totalorder %s21, 3
      %p77 = por %p75, %p76
      %p78 = scmp.ne.s32.totalorder %s67, %s68
      %p79 = scmp.eq.s32.totalorder %s21, 0
      %p80 = por %p78, %p79
      %p81 = scmp.ne.s32.totalorder %s67, %s68
      %p82 = scmp.eq.s32.totalorder %s22, 3
      %p83 = por %p81, %p82
      %p85 = scmp.ne.s32.totalorder %s68, %s84
      %p86 = scmp.eq.s32.totalorder %s22, 0
      %p87 = por %p85, %p86
      %s88 = ssub.s32 %s23, %s35
      %p89 = scmp.eq.s32.totalorder %s88, 0
      %s91 = sadd.s32 %s90, 1
      %s92 = scalar_select %p89, %s90, %s91
      %p95 = pneg %p89
      %p96 = scmp.eq.s32.totalorder %s16, 3
      %p97 = por %p95, %p96
      %p98 = scmp.ne.s32.totalorder %s90, %s93
      %p99 = scmp.eq.s32.totalorder %s16, 0
      %p100 = por %p98, %p99
      %p101 = scmp.ne.s32.totalorder %s90, %s93
      %p102 = scmp.eq.s32.totalorder %s21, 3
      %p103 = por %p101, %p102
      %p104 = scmp.ne.s32.totalorder %s93, %s94
      %p105 = scmp.eq.s32.totalorder %s21, 0
      %p106 = por %p104, %p105
      %p107 = scmp.ne.s32.totalorder %s93, %s94
      %p108 = scmp.eq.s32.totalorder %s22, 3
      %p109 = por %p107, %p108
      %p111 = scmp.ne.s32.totalorder %s94, %s110
      %p112 = scmp.eq.s32.totalorder %s22, 0
      %p113 = por %p111, %p112
      %s114 = ssub.s32 %s24, %s31
      %s115 = ssub.s32 %s23, %s35
      %s116 = sor.u32 %s114, %s115
      %p117 = scmp.eq.s32.totalorder %s116, 0
      %s119 = sadd.s32 %s118, 1
      %s120 = scalar_select %p117, %s118, %s119
      %p123 = pneg %p117
      %p124 = scmp.eq.s32.totalorder %s16, 3
      %p125 = por %p123, %p124
      %p126 = scmp.ne.s32.totalorder %s118, %s121
      %p127 = scmp.eq.s32.totalorder %s16, 0
      %p128 = por %p126, %p127
      %p129 = scmp.ne.s32.totalorder %s118, %s121
      %p130 = scmp.eq.s32.totalorder %s21, 3
      %p131 = por %p129, %p130
      %p132 = scmp.ne.s32.totalorder %s121, %s122
      %p133 = scmp.eq.s32.totalorder %s21, 0
      %p134 = por %p132, %p133
      %p135 = scmp.ne.s32.totalorder %s121, %s122
      %p136 = scmp.eq.s32.totalorder %s22, 3
      %p137 = por %p135, %p136
      %p139 = scmp.ne.s32.totalorder %s122, %s138
      %p140 = scmp.eq.s32.totalorder %s22, 0
      %p141 = por %p139, %p140
      %p142 = scmp.le.s32.totalorder 1, %s16
      %p143 = scmp.lt.s32.totalorder %s16, 5
      %p144 = pnand %p142, %p143
      %p145 = pneg %p144
      // Predicated region
      $region9: #{tpu_custom_call.1} parent=5 // pred_check
        _
      $region10: #{tpu_custom_call.1} parent=5 // pred_check_branch
        %147 = sbr.rel (%p144) target = $region12
      $region11: #{tpu_custom_call.1} parent=5 // pred_region
        %s148 = ssub.s32 %s16, 1
        // Predicated region
        $region13: #{tpu_custom_call.1} parent=11 // pred_check
          %p149 = pneg %p80
        $region14: #{tpu_custom_call.1} parent=11 // pred_check_branch
          %151 = sbr.rel (%p149) target = $region16
        $region15: #{tpu_custom_call.1} parent=11 // pred_region
          %s152 = smul.u32 2, %s25
          %s154 = ssub.s32 2048, 2048
          %155 = vsyncadd [#allocation6], %s154
          %s156 = smul.addr %s152, 64
          %s157 = scalar_lea.hbm %s1, %s156
          %s158 = sshll.u32 [#allocation5], 4
          %s159 = int_to_ptr.vmem [resolvable:$true] %s158
          %164 = dma.hbm_to_vmem [thread:$0]  %s157, 2048, %s159, [#allocation6], 128, 128, 8
        $region16: #{tpu_custom_call.1} parent=11 // pred_fallthru
          _
        // Predicated region
        $region17: #{tpu_custom_call.1} parent=11 // pred_check
          %p165 = pneg %p106
        $region18: #{tpu_custom_call.1} parent=11 // pred_check_branch
          %167 = sbr.rel (%p165) target = $region20
        $region19: #{tpu_custom_call.1} parent=11 // pred_region
          %s168 = smul.u32 2, %s25
          %p169 = scmp.lt.s32.totalorder %s168, 1
          %s170 = scalar_select %p169, %s168, 1
          %s171 = scalar_lea.vmem %s2, %s170
          %s172 = smul.u32 2, %s25
        $region20: #{tpu_custom_call.1} parent=11 // pred_fallthru
          _
      $region12: #{tpu_custom_call.1} parent=5 // pred_fallthru
        _
      %p173 = scmp.lt.s32.totalorder %s16, 4
      // Predicated region
      $region21: #{tpu_custom_call.1} parent=5 // pred_check
        %p174 = pneg %p173
      $region22: #{tpu_custom_call.1} parent=5 // pred_check_branch
        %176 = sbr.rel (%p174) target = $region24
      $region23: #{tpu_custom_call.1} parent=5 // pred_region
        // Predicated region
        $region25: #{tpu_custom_call.1} parent=23 // pred_check
          %p177 = pneg %p48
        $region26: #{tpu_custom_call.1} parent=23 // pred_check_branch
          %179 = sbr.rel (%p177) target = $region28
        $region27: #{tpu_custom_call.1} parent=23 // pred_region
          %s180 = sand.u32 %s38, 1
          %s181 = scalar_lea.sflag [#allocation3], %s180
          %s182 = sand.u32 %s38, 1
          %s183 = smul.addr %s182, 16
          %s184 = scalar_lea.vmem [#allocation2], %s183
          %s185 = smul.u32 2, %s24
          %s187 = ssub.s32 256, 256
          %188 = vsyncadd %s181, %s187
          %s189 = smul.addr %s185, 128
          %s190 = scalar_lea.hbm %s0, %s189
          %s191 = sshll.u32 %s184, 4
          %s192 = int_to_ptr.vmem [resolvable:$true] %s191
          %197 = dma.hbm_to_vmem [thread:$0]  %s190, 256, %s192, %s181, 128, 128, 8
        $region28: #{tpu_custom_call.1} parent=23 // pred_fallthru
          _
      $region24: #{tpu_custom_call.1} parent=5 // pred_fallthru
        _
      %p198 = scmp.le.s32.totalorder 1, %s16
      %p199 = scmp.lt.s32.totalorder %s16, 5
      %p200 = pnand %p198, %p199
      %p201 = pneg %p200
      // Predicated region
      $region29: #{tpu_custom_call.1} parent=5 // pred_check
        _
      $region30: #{tpu_custom_call.1} parent=5 // pred_check_branch
        %203 = sbr.rel (%p200) target = $region32
      $region31: #{tpu_custom_call.1} parent=5 // pred_region
        %s204 = ssub.s32 %s16, 1
        %s205 = sand.u32 %s41, 1
        %s206 = scalar_lea.sflag [#allocation3], %s205
        %s207 = sand.u32 %s41, 1
        %s208 = smul.addr %s207, 16
        %s209 = scalar_lea.vmem [#allocation2], %s208
        // Predicated region
        $region33: #{tpu_custom_call.1} parent=31 // pred_check
          %p210 = pneg %p54
        $region34: #{tpu_custom_call.1} parent=31 // pred_check_branch
          %212 = sbr.rel (%p210) target = $region36
        $region35: #{tpu_custom_call.1} parent=31 // pred_region
          %213 = dma.done %s206, 256
        $region36: #{tpu_custom_call.1} parent=31 // pred_fallthru
          _
        // Predicated region
        $region37: #{tpu_custom_call.1} parent=31 // pred_check
          %p214 = pneg %p80
        $region38: #{tpu_custom_call.1} parent=31 // pred_check_branch
          %216 = sbr.rel (%p214) target = $region40
        $region39: #{tpu_custom_call.1} parent=31 // pred_region
          %217 = dma.done [#allocation6], 2048
        $region40: #{tpu_custom_call.1} parent=31 // pred_fallthru
          _
        %s218 = sand.u32 %s41, 1
        %s219 = scalar_lea.sflag [#allocation3], %s218
        %s220 = sand.u32 %s41, 1
        %s221 = smul.addr %s220, 16
        %s222 = scalar_lea.vmem [#allocation2], %s221
        %p223 = pneg %p54
        %p224 = pneg %p51
        %p225 = pneg %p80
        %p226 = pneg %p77
        %s227 = smul.u32 2, %s25
        %p228 = scmp.lt.s32.totalorder %s227, 1
        %s229 = scalar_select %p228, %s227, 1
        %s230 = scalar_lea.vmem %s2, %s229
        %p231 = pneg %p106
        %p232 = pneg %p103
        %p233 = pneg %p134
        %p234 = pneg %p131
        %s235 = sand.u32 %s121, 1
        %s236 = scalar_lea.sflag [#allocation4], %s235
        %s237 = sand.u32 %s121, 1
        %s238 = smul.addr %s237, 16
        %s239 = scalar_lea.vmem [#allocation7], %s238
        %s240 = smul.u32 2, %s26
        %s241 = smul.u32 2, %s25
        %s242 = smul.u32 2, %s25
        %p243 = scmp.lt.s32.totalorder %s242, 1
        %s244 = scalar_select %p243, %s242, 1
        %s245 = scalar_lea.vmem %s2, %s244
        %s246 = smul.u32 2, %s25
        %s247 = smul.u32 2, %s26
        %v249 = vld [vmem:[%s209] sm:$0xff]
        %v250 = vld [vmem:[%s209 + $0x8] sm:$0xff]
        %v251 = vpack.c.bf16 %v250, %v249
        %v252 = vld [vmem:[#allocation5] sm:$0xff]
        %v253 = vld [vmem:[#allocation5 + $0x8] sm:$0xff]
        %v254 = vld [vmem:[#allocation5 + $0x10] sm:$0xff]
        %v255 = vld [vmem:[#allocation5 + $0x18] sm:$0xff]
        %v256 = vld [vmem:[#allocation5 + $0x20] sm:$0xff]
        %v257 = vld [vmem:[#allocation5 + $0x28] sm:$0xff]
        %v258 = vld [vmem:[#allocation5 + $0x30] sm:$0xff]
        %v259 = vld [vmem:[#allocation5 + $0x38] sm:$0xff]
        %v260 = vld [vmem:[#allocation5 + $0x40] sm:$0xff]
        %v261 = vld [vmem:[#allocation5 + $0x48] sm:$0xff]
        %v262 = vld [vmem:[#allocation5 + $0x50] sm:$0xff]
        %v263 = vld [vmem:[#allocation5 + $0x58] sm:$0xff]
        %v264 = vld [vmem:[#allocation5 + $0x60] sm:$0xff]
        %v265 = vld [vmem:[#allocation5 + $0x68] sm:$0xff]
        %v266 = vld [vmem:[#allocation5 + $0x70] sm:$0xff]
        %v267 = vld [vmem:[#allocation5 + $0x78] sm:$0xff]
        %v268 = vld [vmem:[%s245] sm:$0x3]
        %v270 = vlaneseq
        %v271 = vshrl.u32 %v270, 7
        %v272 = vsub.s32 0, %v271
        %v273 = vrot.slane %v268, %v272
        %v274 = vlaneseq
        %v275 = vshrl.u32 %v274, 7
        %v276 = vsub.s32 1, %v275
        %v277 = vrot.slane %v268, %v276
        %v296 = vunpack.c.l.b16 %v252
        %v297 = vunpack.c.h.b16 %v252
        %v298 = vunpack.c.l.b16 %v253
        %v299 = vunpack.c.h.b16 %v253
        %v300 = vunpack.c.l.b16 %v254
        %v301 = vunpack.c.h.b16 %v254
        %v302 = vunpack.c.l.b16 %v255
        %v303 = vunpack.c.h.b16 %v255
        %v304 = vunpack.c.l.b16 %v256
        %v305 = vunpack.c.h.b16 %v256
        %v306 = vunpack.c.l.b16 %v257
        %v307 = vunpack.c.h.b16 %v257
        %v308 = vunpack.c.l.b16 %v258
        %v309 = vunpack.c.h.b16 %v258
        %v310 = vunpack.c.l.b16 %v259
        %v311 = vunpack.c.h.b16 %v259
        %v312 = vunpack.c.l.b16 %v260
        %v313 = vunpack.c.h.b16 %v260
        %v314 = vunpack.c.l.b16 %v261
        %v315 = vunpack.c.h.b16 %v261
        %v316 = vunpack.c.l.b16 %v262
        %v317 = vunpack.c.h.b16 %v262
        %v318 = vunpack.c.l.b16 %v263
        %v319 = vunpack.c.h.b16 %v263
        %v320 = vunpack.c.l.b16 %v264
        %v321 = vunpack.c.h.b16 %v264
        %v322 = vunpack.c.l.b16 %v265
        %v323 = vunpack.c.h.b16 %v265
        %v324 = vunpack.c.l.b16 %v266
        %v325 = vunpack.c.h.b16 %v266
        %v326 = vunpack.c.l.b16 %v267
        %v327 = vunpack.c.h.b16 %v267
        %v328 = vpack.c.b16 %v298, %v296
        %v329 = vpack.c.b16 %v299, %v297
        %v330 = vpack.c.b16 %v302, %v300
        %v331 = vpack.c.b16 %v303, %v301
        %v332 = vpack.c.b16 %v306, %v304
        %v333 = vpack.c.b16 %v307, %v305
        %v334 = vpack.c.b16 %v310, %v308
        %v335 = vpack.c.b16 %v311, %v309
        %v336 = vpack.c.b16 %v314, %v312
        %v337 = vpack.c.b16 %v315, %v313
        %v338 = vpack.c.b16 %v318, %v316
        %v339 = vpack.c.b16 %v319, %v317
        %v340 = vpack.c.b16 %v322, %v320
        %v341 = vpack.c.b16 %v323, %v321
        %v342 = vpack.c.b16 %v326, %v324
        %v343 = vpack.c.b16 %v327, %v325
        %360 = vmatprep.subr.bf16.mxu0 %v329
        %361 = vmatpush1.bf16.msra.mxu0 %v328
        %362 = vmatprep.subr.bf16.mxu0 %v331
        %363 = vmatpush1.bf16.msra.mxu0 %v330
        %364 = vmatprep.subr.bf16.mxu0 %v333
        %365 = vmatpush1.bf16.msra.mxu0 %v332
        %366 = vmatprep.subr.bf16.mxu0 %v335
        %367 = vmatpush1.bf16.msra.mxu0 %v334
        %368 = vmatprep.subr.bf16.mxu0 %v337
        %369 = vmatpush1.bf16.msra.mxu0 %v336
        %370 = vmatprep.subr.bf16.mxu0 %v339
        %371 = vmatpush1.bf16.msra.mxu0 %v338
        %372 = vmatprep.subr.bf16.mxu0 %v341
        %373 = vmatpush1.bf16.msra.mxu0 %v340
        %374 = vmatprep.subr.bf16.mxu0 %v343
        %375 = vmatpush1.bf16.msra.mxu0 %v342
        %376 = vmatprep.subr.bf16.mxu0 0
        %377 = vmatpush1.bf16.msra.mxu0 0
        %378 = vmatprep.subr.bf16.mxu0 0
        %379 = vmatpush1.bf16.msra.mxu0 0
        %380 = vmatprep.subr.bf16.mxu0 0
        %381 = vmatpush1.bf16.msra.mxu0 0
        %382 = vmatprep.subr.bf16.mxu0 0
        %383 = vmatpush1.bf16.msra.mxu0 0
        %384 = vmatprep.subr.bf16.mxu0 0
        %385 = vmatpush1.bf16.msra.mxu0 0
        %386 = vmatprep.subr.bf16.mxu0 0
        %387 = vmatpush1.bf16.msra.mxu0 0
        %388 = vmatprep.subr.bf16.mxu0 0
        %389 = vmatpush1.bf16.msra.mxu0 0
        %390 = vmatprep.subr.bf16.mxu0 0
        %391 = vmatpush1.bf16.msra.mxu0 0
        %392 = vmatprep.mubr.bf16.mxu0 0
        %393 = vmatmul.mubr.bf16.gmra.mrb[0].mxu0 %v251
        %v394 = vpop.f32.mrb[0].mxu0
        %v395 = vadd.f32 %v273, %v394
        %v396 = vpop.f32.mrb[0].mxu0
        %v397 = vadd.f32 %v277, %v396
        %v398 = vpop.f32.mrb[0].mxu0
        %v399 = vadd.f32 %v273, %v398
        %v400 = vpop.f32.mrb[0].mxu0
        %v401 = vadd.f32 %v277, %v400
        %402 = vdwg.mxu0
        %v403 = vxor.u32 %v397, 2147483648
        %v404 = vxor.u32 %v401, 2147483648
        %v405 = vmul.f32 %v403, 1.442695
        %v406 = vpow.pop %v405
        %v407 = vmul.f32 %v404, 1.442695
        %v408 = vpow.pop %v407
        %v409 = vadd.f32 %v406, 1.0
        %v410 = vadd.f32 %v408, 1.0
        %v411 = vrcp.pop %v409
        %v412 = vmul.f32 1.0, %v411
        %v413 = vrcp.pop %v410
        %v414 = vmul.f32 1.0, %v413
        %v415 = vmul.f32 %v395, %v412
        %v416 = vmul.f32 %v399, %v414
        %v417 = vadd.f32 %v415, %v249
        %v418 = vadd.f32 %v416, %v250
        %419 = vst [vmem:[%s239] sm:$0xff] %v417
        %420 = vst [vmem:[%s239 + $0x8] sm:$0xff] %v418
        %s421 = sand.u32 %s121, 1
        %s422 = scalar_lea.sflag [#allocation4], %s421
        %s423 = sand.u32 %s121, 1
        %s424 = smul.addr %s423, 16
        %s425 = scalar_lea.vmem [#allocation7], %s424
        // Predicated region
        $region41: #{tpu_custom_call.1} parent=31 // pred_check
          %p426 = pneg %p131
        $region42: #{tpu_custom_call.1} parent=31 // pred_check_branch
          %428 = sbr.rel (%p426) target = $region44
        $region43: #{tpu_custom_call.1} parent=31 // pred_region
          %s429 = smul.u32 2, %s26
          %s431 = ssub.s32 256, 256
          %432 = vsyncadd %s422, %s431
          %s433 = sadd.s32 %s25, %s429
          %s434 = smul.addr %s433, 128
          %s435 = scalar_lea.hbm %s3, %s434
          %s436 = sshll.u32 %s425, 4
          %s437 = int_to_ptr.vmem [resolvable:$true] %s436
          %442 = dma.vmem_to_hbm [thread:$0]  %s437, 256, %s435, %s422, 128, 128, 8
        $region44: #{tpu_custom_call.1} parent=31 // pred_fallthru
          _
      $region32: #{tpu_custom_call.1} parent=5 // pred_fallthru
        _
      %p443 = scmp.le.s32.totalorder 2, %s16
      // Predicated region
      $region45: #{tpu_custom_call.1} parent=5 // pred_check
        %p444 = pneg %p443
      $region46: #{tpu_custom_call.1} parent=5 // pred_check_branch
        %446 = sbr.rel (%p444) target = $region48
      $region47: #{tpu_custom_call.1} parent=5 // pred_region
        %s447 = ssub.s32 %s16, 2
        // Predicated region
        $region49: #{tpu_custom_call.1} parent=47 // pred_check
          %p448 = pneg %p137
        $region50: #{tpu_custom_call.1} parent=47 // pred_check_branch
          %450 = sbr.rel (%p448) target = $region52
        $region51: #{tpu_custom_call.1} parent=47 // pred_region
          %s451 = sand.u32 %s122, 1
          %s452 = scalar_lea.sflag [#allocation4], %s451
          %s453 = sand.u32 %s122, 1
          %s454 = smul.addr %s453, 16
          %s455 = scalar_lea.vmem [#allocation7], %s454
          %456 = dma.done %s452, 256
        $region52: #{tpu_custom_call.1} parent=47 // pred_fallthru
          _
      $region48: #{tpu_custom_call.1} parent=5 // pred_fallthru
        _
    $region6: #{tpu_custom_call.1} parent=1 // loop_footer
      %s20 = sadd.s32 1, %s16
    $region7: #{tpu_custom_call.1} parent=1 // loop_footer_branch
      %15 = sbr.rel target = $region3
    $region8: #{tpu_custom_call.1} parent=1 // loop_exit
      _
    %457 = vsyncpa [#allocation3], 1
    %s458 = scalar_lea.sflag [#allocation3], 1
    %459 = vsyncpa %s458, 1
    %460 = vsyncpa [#allocation6], 1
    %461 = vsyncpa [#allocation4], 1
    %s462 = scalar_lea.sflag [#allocation4], 1
    %463 = vsyncpa %s462, 1

</llo_original>
